<compile_context>
chip_gen: v6e
topology: v6e:2x2x1
jax: 0.10.0
libtpu: 0.0.40
codegen_flags: <defaults>
</compile_context>

<pallas_src>
import functools

import jax
import jax.numpy as jnp
from jax.experimental import pallas as pl
from jax.experimental.pallas import tpu as pltpu

_LANE = 128  # lane width: hidden and class dims are padded to this


def _round_up(n, m):
    return ((n + m - 1) // m) * m


def _classification_kernel(x_ref, w1_ref, b1_ref, w2_ref, b2_ref, o_ref):
    """Single-invocation kernel: all 4 evidence paths unrolled in one body.

    x_ref : (P, B, L, D)   stacked sequence features (MXU dtype, resident VMEM)
    w1_ref: (P, D, Hp)     first-layer weights, H lane-padded (MXU dtype)
    b1_ref: (P, 1, Hp)     f32
    w2_ref: (P, Hp, Cp)    classifier weights, lane-padded (MXU dtype)
    b2_ref: (P, 1, Cp)     f32
    o_ref : (P*B, Cp)      f32, lane+sublane-dense logits (stored once)
    """
    P, B, L, D = x_ref.shape
    inv_l = jnp.float32(1.0 / L)
    mxu_dtype = w1_ref.dtype

    logits = []
    for p in range(P):  # unrolled; the 4 paths' vmatmuls interleave
        # f32-accumulated mean pool over the sequence dim.
        pooled = jnp.sum(x_ref[p].astype(jnp.float32), axis=1) * inv_l  # (B, D)
        pooled = pooled.astype(mxu_dtype)  # tiny (B, D) cast for the MXU

        h = jnp.dot(pooled, w1_ref[p], preferred_element_type=jnp.float32)  # (B, Hp)
        h = jnp.maximum(h + b1_ref[p], 0.0)  # f32 VPU (v5e-safe)
        # Dropout: identity at inference time.
        h = h.astype(mxu_dtype)

        y = jnp.dot(h, w2_ref[p], preferred_element_type=jnp.float32)  # (B, Cp)
        logits.append(y + b2_ref[p])

    # One full unmasked store of the (P*B, Cp) slab.
    o_ref[...] = jnp.concatenate(logits, axis=0).astype(o_ref.dtype)


@functools.partial(jax.jit, static_argnames=("mxu_dtype",))
def classification_module_forward(x_paths, w1, b1, w2, b2,
                                  mxu_dtype=jnp.bfloat16):
    """Runs the 4 evidence-path MLPs in one single-step Pallas call.

    Args:
      x_paths: (4, B, L, D)  stacked [S_t_t, S_t_i, S_i_t, S_i_i]
      w1:      (4, D, H)     first-layer weights per path
      b1:      (4, 1, H)
      w2:      (4, H, C)
      b2:      (4, 1, C)
      mxu_dtype: dtype for MXU operands (default bf16 on all generations);
                 pass None for full-f32 operands.
    Returns:
      (4, B, C) float32 logits per path.
    """
    P, B, L, D = x_paths.shape
    H = w1.shape[-1]
    C = w2.shape[-1]
    h_pad = max(_LANE, _round_up(H, _LANE))
    c_pad = max(_LANE, _round_up(C, _LANE))

    # Lane-dense padding of hidden and class dims (tiny, jit-cached XLA pads
    # outside the kernel; padded rows/cols are zero so results are unchanged).
    w1_p = jnp.pad(w1, ((0, 0), (0, 0), (0, h_pad - H)))
    b1_p = jnp.pad(b1, ((0, 0), (0, 0), (0, h_pad - H)))
    w2_p = jnp.pad(w2, ((0, 0), (0, h_pad - H), (0, c_pad - C)))
    b2_p = jnp.pad(b2, ((0, 0), (0, 0), (0, c_pad - C)))

    # Pre-cast MXU operands in the wrapper (no in-kernel weight casts, halves
    # the weight/input DMA bytes). Biases stay f32 for the f32 elementwise path.
    if mxu_dtype is not None:
        x_in = x_paths.astype(mxu_dtype)
        w1_p = w1_p.astype(mxu_dtype)
        w2_p = w2_p.astype(mxu_dtype)
    else:
        x_in = x_paths
    b1_p = b1_p.astype(jnp.float32)
    b2_p = b2_p.astype(jnp.float32)

    out_padded = pl.pallas_call(
        _classification_kernel,
        # Sublane+lane-dense output: (P*B, c_pad) rows, path-major.
        out_shape=jax.ShapeDtypeStruct((P * B, c_pad), jnp.float32),
        # Single grid step: every operand is one whole-array VMEM block,
        # so weights are loaded exactly once (no per-path re-tiling DMAs).
        in_specs=[pl.BlockSpec(memory_space=pltpu.MemorySpace.VMEM)] * 5,
        out_specs=pl.BlockSpec(memory_space=pltpu.MemorySpace.VMEM),
    )(x_in, w1_p, b1_p, w2_p, b2_p)

    return out_padded[:, :C].reshape(P, B, C)


def init_params(key, embed_dim, hidden_dim, num_classes, num_paths=4):
    """Deterministic PyTorch-style (uniform +-1/sqrt(fan_in)) init."""
    ks = jax.random.split(key, 4)
    lim1 = 1.0 / jnp.sqrt(embed_dim)
    lim2 = 1.0 / jnp.sqrt(hidden_dim)
    w1 = jax.random.uniform(ks[0], (num_paths, embed_dim, hidden_dim),
                            jnp.float32, -lim1, lim1)
    b1 = jax.random.uniform(ks[1], (num_paths, 1, hidden_dim),
                            jnp.float32, -lim1, lim1)
    w2 = jax.random.uniform(ks[2], (num_paths, hidden_dim, num_classes),
                            jnp.float32, -lim2, lim2)
    b2 = jax.random.uniform(ks[3], (num_paths, 1, num_classes),
                            jnp.float32, -lim2, lim2)
    return w1, b1, w2, b2


def reference_forward(x_paths, w1, b1, w2, b2):
    pooled = jnp.mean(x_paths, axis=2)                         # (4, B, D)
    h = jnp.maximum(jnp.einsum("pbd,pdh->pbh", pooled, w1) + b1, 0.0)
    return jnp.einsum("pbh,phc->pbc", h, w2) + b2              # (4, B, C)


if __name__ == "__main__":
    embed_dim, hidden_dim, num_classes = 256, 64, 3
    B, L = 2, 8

    key = jax.random.PRNGKey(0)
    k_x, k_p = jax.random.split(key)

    # Stacked evidence-path inputs: [S_t_t, S_t_i, S_i_t, S_i_i], each (B, L, D).
    x_paths = jax.random.normal(k_x, (4, B, L, embed_dim), jnp.float32)
    w1, b1, w2, b2 = init_params(k_p, embed_dim, hidden_dim, num_classes)

    ref = reference_forward(x_paths, w1, b1, w2, b2)

    # Default path: bf16 MXU operands (all generations), f32 pooling/accumulate.
    logits = classification_module_forward(x_paths, w1, b1, w2, b2)
    logits = jax.block_until_ready(logits)
    assert logits.shape == (4, B, num_classes)
    assert jnp.allclose(logits, ref, atol=5e-2, rtol=5e-2)

    # Full-f32 variant: tight check against the pure-JAX reference.
    logits_f32 = classification_module_forward(
        x_paths, w1, b1, w2, b2, mxu_dtype=None)
    logits_f32 = jax.block_until_ready(logits_f32)
    assert jnp.allclose(logits_f32, ref, atol=1e-4, rtol=1e-4)

    # Unpack into the module's return structure: ((y_t_t, y_t_i), (y_i_t, y_i_i))
    result = ((logits[0], logits[1]), (logits[2], logits[3]))

    print("KERNEL_OK")
</pallas_src>

<mosaic_0001>
module attributes {stable_mosaic.version = 11 : i64} {
  func.func @_classification_kernel(%arg0: memref<4x2x8x256xbf16, #tpu.memory_space<vmem>>, %arg1: memref<4x256x128xbf16, #tpu.memory_space<vmem>>, %arg2: memref<4x1x128xf32, #tpu.memory_space<vmem>>, %arg3: memref<4x128x128xbf16, #tpu.memory_space<vmem>>, %arg4: memref<4x1x128xf32, #tpu.memory_space<vmem>>, %arg5: memref<8x128xf32, #tpu.memory_space<vmem>>) attributes {dimension_semantics = [], scalar_prefetch = 0 : i64, scratch_operands = 0 : i64, tpu.core_type = #tpu.core_type<tc>} {
    %c0 = arith.constant 0 : index
    %c0_0 = arith.constant 0 : index
    %c0_1 = arith.constant 0 : index
    %c0_2 = arith.constant 0 : index
    %0 = vector.load %arg0[%c0, %c0_0, %c0_1, %c0_2] : memref<4x2x8x256xbf16, #tpu.memory_space<vmem>>, vector<1x2x8x256xbf16>
    %1 = vector.shape_cast %0 : vector<1x2x8x256xbf16> to vector<2x8x256xbf16>
    %2 = arith.extf %1 : vector<2x8x256xbf16> to vector<2x8x256xf32>
    %cst = arith.constant dense<0.000000e+00> : vector<2x256xf32>
    %3 = vector.multi_reduction <add>, %2, %cst [1] : vector<2x8x256xf32> to vector<2x256xf32>
    %cst_3 = arith.constant 1.250000e-01 : f32
    %4 = vector.broadcast %cst_3 : f32 to vector<2x256xf32>
    %5 = arith.mulf %3, %4 : vector<2x256xf32>
    %6 = arith.truncf %5 : vector<2x256xf32> to vector<2x256xbf16>
    %c0_4 = arith.constant 0 : index
    %c0_5 = arith.constant 0 : index
    %c0_6 = arith.constant 0 : index
    %7 = vector.load %arg1[%c0_4, %c0_5, %c0_6] : memref<4x256x128xbf16, #tpu.memory_space<vmem>>, vector<1x256x128xbf16>
    %8 = vector.shape_cast %7 : vector<1x256x128xbf16> to vector<256x128xbf16>
    %cst_7 = arith.constant dense<0.000000e+00> : vector<2x128xf32>
    %9 = tpu.matmul %6, %8, %cst_7 {dimension_numbers = #tpu.dot_dimension_numbers<[1], [0], [0], [1], [0, 0, 1, 1], [], []>} : vector<2x256xbf16>, vector<256x128xbf16>, vector<2x128xf32> -> vector<2x128xf32>
    %c0_8 = arith.constant 0 : index
    %c0_9 = arith.constant 0 : index
    %c0_10 = arith.constant 0 : index
    %10 = vector.load %arg2[%c0_8, %c0_9, %c0_10] : memref<4x1x128xf32, #tpu.memory_space<vmem>>, vector<1x1x128xf32>
    %11 = vector.shape_cast %10 : vector<1x1x128xf32> to vector<1x128xf32>
    %12 = vector.broadcast %11 : vector<1x128xf32> to vector<2x128xf32>
    %13 = arith.addf %9, %12 : vector<2x128xf32>
    %cst_11 = arith.constant 0.000000e+00 : f32
    %14 = vector.broadcast %cst_11 : f32 to vector<2x128xf32>
    %15 = arith.maximumf %13, %14 : vector<2x128xf32>
    %16 = arith.truncf %15 : vector<2x128xf32> to vector<2x128xbf16>
    %c0_12 = arith.constant 0 : index
    %c0_13 = arith.constant 0 : index
    %c0_14 = arith.constant 0 : index
    %17 = vector.load %arg3[%c0_12, %c0_13, %c0_14] : memref<4x128x128xbf16, #tpu.memory_space<vmem>>, vector<1x128x128xbf16>
    %18 = vector.shape_cast %17 : vector<1x128x128xbf16> to vector<128x128xbf16>
    %cst_15 = arith.constant dense<0.000000e+00> : vector<2x128xf32>
    %19 = tpu.matmul %16, %18, %cst_15 {dimension_numbers = #tpu.dot_dimension_numbers<[1], [0], [0], [1], [0, 0, 1, 1], [], []>} : vector<2x128xbf16>, vector<128x128xbf16>, vector<2x128xf32> -> vector<2x128xf32>
    %c0_16 = arith.constant 0 : index
    %c0_17 = arith.constant 0 : index
    %c0_18 = arith.constant 0 : index
    %20 = vector.load %arg4[%c0_16, %c0_17, %c0_18] : memref<4x1x128xf32, #tpu.memory_space<vmem>>, vector<1x1x128xf32>
    %21 = vector.shape_cast %20 : vector<1x1x128xf32> to vector<1x128xf32>
    %22 = vector.broadcast %21 : vector<1x128xf32> to vector<2x128xf32>
    %23 = arith.addf %19, %22 : vector<2x128xf32>
    %c1 = arith.constant 1 : index
    %c0_19 = arith.constant 0 : index
    %c0_20 = arith.constant 0 : index
    %c0_21 = arith.constant 0 : index
    %24 = vector.load %arg0[%c1, %c0_19, %c0_20, %c0_21] : memref<4x2x8x256xbf16, #tpu.memory_space<vmem>>, vector<1x2x8x256xbf16>
    %25 = vector.shape_cast %24 : vector<1x2x8x256xbf16> to vector<2x8x256xbf16>
    %26 = arith.extf %25 : vector<2x8x256xbf16> to vector<2x8x256xf32>
    %cst_22 = arith.constant dense<0.000000e+00> : vector<2x256xf32>
    %27 = vector.multi_reduction <add>, %26, %cst_22 [1] : vector<2x8x256xf32> to vector<2x256xf32>
    %cst_23 = arith.constant 1.250000e-01 : f32
    %28 = vector.broadcast %cst_23 : f32 to vector<2x256xf32>
    %29 = arith.mulf %27, %28 : vector<2x256xf32>
    %30 = arith.truncf %29 : vector<2x256xf32> to vector<2x256xbf16>
    %c1_24 = arith.constant 1 : index
    %c0_25 = arith.constant 0 : index
    %c0_26 = arith.constant 0 : index
    %31 = vector.load %arg1[%c1_24, %c0_25, %c0_26] : memref<4x256x128xbf16, #tpu.memory_space<vmem>>, vector<1x256x128xbf16>
    %32 = vector.shape_cast %31 : vector<1x256x128xbf16> to vector<256x128xbf16>
    %cst_27 = arith.constant dense<0.000000e+00> : vector<2x128xf32>
    %33 = tpu.matmul %30, %32, %cst_27 {dimension_numbers = #tpu.dot_dimension_numbers<[1], [0], [0], [1], [0, 0, 1, 1], [], []>} : vector<2x256xbf16>, vector<256x128xbf16>, vector<2x128xf32> -> vector<2x128xf32>
    %c1_28 = arith.constant 1 : index
    %c0_29 = arith.constant 0 : index
    %c0_30 = arith.constant 0 : index
    %34 = vector.load %arg2[%c1_28, %c0_29, %c0_30] : memref<4x1x128xf32, #tpu.memory_space<vmem>>, vector<1x1x128xf32>
    %35 = vector.shape_cast %34 : vector<1x1x128xf32> to vector<1x128xf32>
    %36 = vector.broadcast %35 : vector<1x128xf32> to vector<2x128xf32>
    %37 = arith.addf %33, %36 : vector<2x128xf32>
    %cst_31 = arith.constant 0.000000e+00 : f32
    %38 = vector.broadcast %cst_31 : f32 to vector<2x128xf32>
    %39 = arith.maximumf %37, %38 : vector<2x128xf32>
    %40 = arith.truncf %39 : vector<2x128xf32> to vector<2x128xbf16>
    %c1_32 = arith.constant 1 : index
    %c0_33 = arith.constant 0 : index
    %c0_34 = arith.constant 0 : index
    %41 = vector.load %arg3[%c1_32, %c0_33, %c0_34] : memref<4x128x128xbf16, #tpu.memory_space<vmem>>, vector<1x128x128xbf16>
    %42 = vector.shape_cast %41 : vector<1x128x128xbf16> to vector<128x128xbf16>
    %cst_35 = arith.constant dense<0.000000e+00> : vector<2x128xf32>
    %43 = tpu.matmul %40, %42, %cst_35 {dimension_numbers = #tpu.dot_dimension_numbers<[1], [0], [0], [1], [0, 0, 1, 1], [], []>} : vector<2x128xbf16>, vector<128x128xbf16>, vector<2x128xf32> -> vector<2x128xf32>
    %c1_36 = arith.constant 1 : index
    %c0_37 = arith.constant 0 : index
    %c0_38 = arith.constant 0 : index
    %44 = vector.load %arg4[%c1_36, %c0_37, %c0_38] : memref<4x1x128xf32, #tpu.memory_space<vmem>>, vector<1x1x128xf32>
    %45 = vector.shape_cast %44 : vector<1x1x128xf32> to vector<1x128xf32>
    %46 = vector.broadcast %45 : vector<1x128xf32> to vector<2x128xf32>
    %47 = arith.addf %43, %46 : vector<2x128xf32>
    %c2 = arith.constant 2 : index
    %c0_39 = arith.constant 0 : index
    %c0_40 = arith.constant 0 : index
    %c0_41 = arith.constant 0 : index
    %48 = vector.load %arg0[%c2, %c0_39, %c0_40, %c0_41] : memref<4x2x8x256xbf16, #tpu.memory_space<vmem>>, vector<1x2x8x256xbf16>
    %49 = vector.shape_cast %48 : vector<1x2x8x256xbf16> to vector<2x8x256xbf16>
    %50 = arith.extf %49 : vector<2x8x256xbf16> to vector<2x8x256xf32>
    %cst_42 = arith.constant dense<0.000000e+00> : vector<2x256xf32>
    %51 = vector.multi_reduction <add>, %50, %cst_42 [1] : vector<2x8x256xf32> to vector<2x256xf32>
    %cst_43 = arith.constant 1.250000e-01 : f32
    %52 = vector.broadcast %cst_43 : f32 to vector<2x256xf32>
    %53 = arith.mulf %51, %52 : vector<2x256xf32>
    %54 = arith.truncf %53 : vector<2x256xf32> to vector<2x256xbf16>
    %c2_44 = arith.constant 2 : index
    %c0_45 = arith.constant 0 : index
    %c0_46 = arith.constant 0 : index
    %55 = vector.load %arg1[%c2_44, %c0_45, %c0_46] : memref<4x256x128xbf16, #tpu.memory_space<vmem>>, vector<1x256x128xbf16>
    %56 = vector.shape_cast %55 : vector<1x256x128xbf16> to vector<256x128xbf16>
    %cst_47 = arith.constant dense<0.000000e+00> : vector<2x128xf32>
    %57 = tpu.matmul %54, %56, %cst_47 {dimension_numbers = #tpu.dot_dimension_numbers<[1], [0], [0], [1], [0, 0, 1, 1], [], []>} : vector<2x256xbf16>, vector<256x128xbf16>, vector<2x128xf32> -> vector<2x128xf32>
    %c2_48 = arith.constant 2 : index
    %c0_49 = arith.constant 0 : index
    %c0_50 = arith.constant 0 : index
    %58 = vector.load %arg2[%c2_48, %c0_49, %c0_50] : memref<4x1x128xf32, #tpu.memory_space<vmem>>, vector<1x1x128xf32>
    %59 = vector.shape_cast %58 : vector<1x1x128xf32> to vector<1x128xf32>
    %60 = vector.broadcast %59 : vector<1x128xf32> to vector<2x128xf32>
    %61 = arith.addf %57, %60 : vector<2x128xf32>
    %cst_51 = arith.constant 0.000000e+00 : f32
    %62 = vector.broadcast %cst_51 : f32 to vector<2x128xf32>
    %63 = arith.maximumf %61, %62 : vector<2x128xf32>
    %64 = arith.truncf %63 : vector<2x128xf32> to vector<2x128xbf16>
    %c2_52 = arith.constant 2 : index
    %c0_53 = arith.constant 0 : index
    %c0_54 = arith.constant 0 : index
    %65 = vector.load %arg3[%c2_52, %c0_53, %c0_54] : memref<4x128x128xbf16, #tpu.memory_space<vmem>>, vector<1x128x128xbf16>
    %66 = vector.shape_cast %65 : vector<1x128x128xbf16> to vector<128x128xbf16>
    %cst_55 = arith.constant dense<0.000000e+00> : vector<2x128xf32>
    %67 = tpu.matmul %64, %66, %cst_55 {dimension_numbers = #tpu.dot_dimension_numbers<[1], [0], [0], [1], [0, 0, 1, 1], [], []>} : vector<2x128xbf16>, vector<128x128xbf16>, vector<2x128xf32> -> vector<2x128xf32>
    %c2_56 = arith.constant 2 : index
    %c0_57 = arith.constant 0 : index
    %c0_58 = arith.constant 0 : index
    %68 = vector.load %arg4[%c2_56, %c0_57, %c0_58] : memref<4x1x128xf32, #tpu.memory_space<vmem>>, vector<1x1x128xf32>
    %69 = vector.shape_cast %68 : vector<1x1x128xf32> to vector<1x128xf32>
    %70 = vector.broadcast %69 : vector<1x128xf32> to vector<2x128xf32>
    %71 = arith.addf %67, %70 : vector<2x128xf32>
    %c3 = arith.constant 3 : index
    %c0_59 = arith.constant 0 : index
    %c0_60 = arith.constant 0 : index
    %c0_61 = arith.constant 0 : index
    %72 = vector.load %arg0[%c3, %c0_59, %c0_60, %c0_61] : memref<4x2x8x256xbf16, #tpu.memory_space<vmem>>, vector<1x2x8x256xbf16>
    %73 = vector.shape_cast %72 : vector<1x2x8x256xbf16> to vector<2x8x256xbf16>
    %74 = arith.extf %73 : vector<2x8x256xbf16> to vector<2x8x256xf32>
    %cst_62 = arith.constant dense<0.000000e+00> : vector<2x256xf32>
    %75 = vector.multi_reduction <add>, %74, %cst_62 [1] : vector<2x8x256xf32> to vector<2x256xf32>
    %cst_63 = arith.constant 1.250000e-01 : f32
    %76 = vector.broadcast %cst_63 : f32 to vector<2x256xf32>
    %77 = arith.mulf %75, %76 : vector<2x256xf32>
    %78 = arith.truncf %77 : vector<2x256xf32> to vector<2x256xbf16>
    %c3_64 = arith.constant 3 : index
    %c0_65 = arith.constant 0 : index
    %c0_66 = arith.constant 0 : index
    %79 = vector.load %arg1[%c3_64, %c0_65, %c0_66] : memref<4x256x128xbf16, #tpu.memory_space<vmem>>, vector<1x256x128xbf16>
    %80 = vector.shape_cast %79 : vector<1x256x128xbf16> to vector<256x128xbf16>
    %cst_67 = arith.constant dense<0.000000e+00> : vector<2x128xf32>
    %81 = tpu.matmul %78, %80, %cst_67 {dimension_numbers = #tpu.dot_dimension_numbers<[1], [0], [0], [1], [0, 0, 1, 1], [], []>} : vector<2x256xbf16>, vector<256x128xbf16>, vector<2x128xf32> -> vector<2x128xf32>
    %c3_68 = arith.constant 3 : index
    %c0_69 = arith.constant 0 : index
    %c0_70 = arith.constant 0 : index
    %82 = vector.load %arg2[%c3_68, %c0_69, %c0_70] : memref<4x1x128xf32, #tpu.memory_space<vmem>>, vector<1x1x128xf32>
    %83 = vector.shape_cast %82 : vector<1x1x128xf32> to vector<1x128xf32>
    %84 = vector.broadcast %83 : vector<1x128xf32> to vector<2x128xf32>
    %85 = arith.addf %81, %84 : vector<2x128xf32>
    %cst_71 = arith.constant 0.000000e+00 : f32
    %86 = vector.broadcast %cst_71 : f32 to vector<2x128xf32>
    %87 = arith.maximumf %85, %86 : vector<2x128xf32>
    %88 = arith.truncf %87 : vector<2x128xf32> to vector<2x128xbf16>
    %c3_72 = arith.constant 3 : index
    %c0_73 = arith.constant 0 : index
    %c0_74 = arith.constant 0 : index
    %89 = vector.load %arg3[%c3_72, %c0_73, %c0_74] : memref<4x128x128xbf16, #tpu.memory_space<vmem>>, vector<1x128x128xbf16>
    %90 = vector.shape_cast %89 : vector<1x128x128xbf16> to vector<128x128xbf16>
    %cst_75 = arith.constant dense<0.000000e+00> : vector<2x128xf32>
    %91 = tpu.matmul %88, %90, %cst_75 {dimension_numbers = #tpu.dot_dimension_numbers<[1], [0], [0], [1], [0, 0, 1, 1], [], []>} : vector<2x128xbf16>, vector<128x128xbf16>, vector<2x128xf32> -> vector<2x128xf32>
    %c3_76 = arith.constant 3 : index
    %c0_77 = arith.constant 0 : index
    %c0_78 = arith.constant 0 : index
    %92 = vector.load %arg4[%c3_76, %c0_77, %c0_78] : memref<4x1x128xf32, #tpu.memory_space<vmem>>, vector<1x1x128xf32>
    %93 = vector.shape_cast %92 : vector<1x1x128xf32> to vector<1x128xf32>
    %94 = vector.broadcast %93 : vector<1x128xf32> to vector<2x128xf32>
    %95 = arith.addf %91, %94 : vector<2x128xf32>
    %96 = tpu.concatenate %23, %47, %71, %95 in 0 : vector<2x128xf32>, vector<2x128xf32>, vector<2x128xf32>, vector<2x128xf32> -> vector<8x128xf32>
    %c0_79 = arith.constant 0 : index
    %c0_80 = arith.constant 0 : index
    %97 = vector.load %arg5[%c0_79, %c0_80] : memref<8x128xf32, #tpu.memory_space<vmem>>, vector<8x128xf32>
    tpu.vector_store %arg5[%c0_79, %c0_80], %96 {strides = array<i32>} : memref<8x128xf32, #tpu.memory_space<vmem>>, vector<8x128xf32>,
    return
  }
}

</mosaic_0001>

<llo_original>
// kernel: classification_module_forward.1
$region0: #{classification_module_forward.1}
  #allocation0 [shape = 'u32[]', space=smem, size = 0x4, offset = 0x4, fixed_abs, tag = 'smem constant byte address 0x4 - core index']
  #allocation1 [shape = 'u32[144,128]{1,0:T(1,128)}', space=vmem, size = 0x12000, scoped, tag = 'internal scratch']
  %s0 = inlined_call_operand.vmem [shape: bf16[4,2,8,256], index: 0, kind: input, shape index: {}]
  %s1 = inlined_call_operand.vmem [shape: bf16[4,256,128], index: 1, kind: input, shape index: {}]
  %s2 = inlined_call_operand.vmem [shape: f32[4,1,128], index: 2, kind: input, shape index: {}]
  %s3 = inlined_call_operand.vmem [shape: bf16[4,128,128], index: 3, kind: input, shape index: {}]
  %s4 = inlined_call_operand.vmem [shape: f32[4,1,128], index: 4, kind: input, shape index: {}]
  %s5 = inlined_call_operand.vmem [shape: f32[8,128], index: 5, kind: output, shape index: {}]
  %s6 = sld [smem:[#allocation0]]
  $region30: #{classification_module_forward.1} parent=0
    _
  %s8 = ssub.s32 1, %s6
  %s9 = scalar_select 0, %s8, %s6
  // Predicated region
  $region2: #{classification_module_forward.1} parent=0 // pred_check
    _
  $region3: #{classification_module_forward.1} parent=0 // pred_check_branch
    %11 = sbr.rel (0) target = $region5
  $region4: #{classification_module_forward.1} parent=0 // pred_region
    _
  $region5: #{classification_module_forward.1} parent=0 // pred_fallthru
    _
  // Predicated region
  $region6: #{classification_module_forward.1} parent=0 // pred_check
    _
  $region7: #{classification_module_forward.1} parent=0 // pred_check_branch
    %13 = sbr.rel (0) target = $region9
  $region8: #{classification_module_forward.1} parent=0 // pred_region
    _
  $region9: #{classification_module_forward.1} parent=0 // pred_fallthru
    _
  // Predicated region
  $region10: #{classification_module_forward.1} parent=0 // pred_check
    _
  $region11: #{classification_module_forward.1} parent=0 // pred_check_branch
    %15 = sbr.rel (0) target = $region13
  $region12: #{classification_module_forward.1} parent=0 // pred_region
    _
  $region13: #{classification_module_forward.1} parent=0 // pred_fallthru
    _
  // Predicated region
  $region14: #{classification_module_forward.1} parent=0 // pred_check
    _
  $region15: #{classification_module_forward.1} parent=0 // pred_check_branch
    %17 = sbr.rel (0) target = $region17
  $region16: #{classification_module_forward.1} parent=0 // pred_region
    _
  $region17: #{classification_module_forward.1} parent=0 // pred_fallthru
    _
  // Predicated region
  $region18: #{classification_module_forward.1} parent=0 // pred_check
    _
  $region19: #{classification_module_forward.1} parent=0 // pred_check_branch
    %19 = sbr.rel (0) target = $region21
  $region20: #{classification_module_forward.1} parent=0 // pred_region
    _
  $region21: #{classification_module_forward.1} parent=0 // pred_fallthru
    _
  %v21 = vld [vmem:[%s0] sm:$0xff]
  %v22 = vld [vmem:[%s0 + $0x8] sm:$0xff]
  %v23 = vunpack.c.l.bf16 %v21
  %v24 = vunpack.c.h.bf16 %v21
  %v25 = vunpack.c.l.bf16 %v22
  %v26 = vunpack.c.h.bf16 %v22
  %v27 = vrot.slane %v23, 4
  %v28 = vadd.f32 %v23, %v27
  %v29 = vrot.slane %v28, 2
  %v30 = vadd.f32 %v28, %v29
  %v31 = vrot.slane %v30, 1
  %v32 = vadd.f32 %v30, %v31
  %v33 = vrot.slane %v24, 4
  %v34 = vadd.f32 %v24, %v33
  %v35 = vrot.slane %v34, 2
  %v36 = vadd.f32 %v34, %v35
  %v37 = vrot.slane %v36, 1
  %v38 = vadd.f32 %v36, %v37
  %v39 = vrot.slane %v25, 4
  %v40 = vadd.f32 %v25, %v39
  %v41 = vrot.slane %v40, 2
  %v42 = vadd.f32 %v40, %v41
  %v43 = vrot.slane %v42, 1
  %v44 = vadd.f32 %v42, %v43
  %v45 = vrot.slane %v26, 4
  %v46 = vadd.f32 %v26, %v45
  %v47 = vrot.slane %v46, 2
  %v48 = vadd.f32 %v46, %v47
  %v49 = vrot.slane %v48, 1
  %v50 = vadd.f32 %v48, %v49
  %v51 = vmul.f32 %v32, 0.125
  %v52 = vmul.f32 %v38, 0.125
  %v53 = vmul.f32 %v44, 0.125
  %v54 = vmul.f32 %v50, 0.125
  %v55 = vpack.c.bf16 %v51, %v51
  %v56 = vpack.c.bf16 %v52, %v52
  %v57 = vpack.c.bf16 %v53, %v53
  %v58 = vpack.c.bf16 %v54, %v54
  %v59 = vld [vmem:[%s1] sm:$0xf]
  %v60 = vld [vmem:[%s1 + $0x4] sm:$0xf]
  %v61 = vld [vmem:[%s1 + $0x8] sm:$0xf]
  %v62 = vld [vmem:[%s1 + $0xc] sm:$0xf]
  %v63 = vld [vmem:[%s1 + $0x10] sm:$0xf]
  %v64 = vld [vmem:[%s1 + $0x14] sm:$0xf]
  %v65 = vld [vmem:[%s1 + $0x18] sm:$0xf]
  %v66 = vld [vmem:[%s1 + $0x1c] sm:$0xf]
  %v67 = vld [vmem:[%s1 + $0x20] sm:$0xf]
  %v68 = vld [vmem:[%s1 + $0x24] sm:$0xf]
  %v69 = vld [vmem:[%s1 + $0x28] sm:$0xf]
  %v70 = vld [vmem:[%s1 + $0x2c] sm:$0xf]
  %v71 = vld [vmem:[%s1 + $0x30] sm:$0xf]
  %v72 = vld [vmem:[%s1 + $0x34] sm:$0xf]
  %v73 = vld [vmem:[%s1 + $0x38] sm:$0xf]
  %v74 = vld [vmem:[%s1 + $0x3c] sm:$0xf]
  %v75 = vld [vmem:[%s1 + $0x40] sm:$0xf]
  %v76 = vld [vmem:[%s1 + $0x44] sm:$0xf]
  %v77 = vld [vmem:[%s1 + $0x48] sm:$0xf]
  %v78 = vld [vmem:[%s1 + $0x4c] sm:$0xf]
  %v79 = vld [vmem:[%s1 + $0x50] sm:$0xf]
  %v80 = vld [vmem:[%s1 + $0x54] sm:$0xf]
  %v81 = vld [vmem:[%s1 + $0x58] sm:$0xf]
  %v82 = vld [vmem:[%s1 + $0x5c] sm:$0xf]
  %v83 = vld [vmem:[%s1 + $0x60] sm:$0xf]
  %v84 = vld [vmem:[%s1 + $0x64] sm:$0xf]
  %v85 = vld [vmem:[%s1 + $0x68] sm:$0xf]
  %v86 = vld [vmem:[%s1 + $0x6c] sm:$0xf]
  %v87 = vld [vmem:[%s1 + $0x70] sm:$0xf]
  %v88 = vld [vmem:[%s1 + $0x74] sm:$0xf]
  %v89 = vld [vmem:[%s1 + $0x78] sm:$0xf]
  %v90 = vld [vmem:[%s1 + $0x7c] sm:$0xf]
  %v91 = vld [vmem:[%s2] sm:$0x1]
  %v93 = vlaneseq
  %v94 = vshrl.u32 %v93, 7
  %v95 = vsub.s32 0, %v94
  %v96 = vrot.slane %v91, %v95
  %v102 = vunpack.c.l.b16 %v55
  %v103 = vunpack.c.l.b16 %v56
  %v104 = vunpack.c.l.b16 %v57
  %v105 = vunpack.c.l.b16 %v58
  %vm106 = vcmask 1041409
  %v107 = vsel %vm106, %v104, %v102
  %v108 = vsel %vm106, %v105, %v103
  %v109 = vpack.c.b16 %v107, %v107
  %v110 = vpack.c.b16 %v108, %v108
  %v145 = vunpack.c.l.b16 %v59
  %v146 = vunpack.c.l.b16 %v60
  %v147 = vunpack.c.l.b16 %v61
  %v148 = vunpack.c.l.b16 %v62
  %v149 = vunpack.c.l.b16 %v63
  %v150 = vunpack.c.l.b16 %v64
  %v151 = vunpack.c.l.b16 %v65
  %v152 = vunpack.c.l.b16 %v66
  %v153 = vunpack.c.l.b16 %v67
  %v154 = vunpack.c.l.b16 %v68
  %v155 = vunpack.c.l.b16 %v69
  %v156 = vunpack.c.l.b16 %v70
  %v157 = vunpack.c.l.b16 %v71
  %v158 = vunpack.c.l.b16 %v72
  %v159 = vunpack.c.l.b16 %v73
  %v160 = vunpack.c.l.b16 %v74
  %v161 = vunpack.c.l.b16 %v75
  %v162 = vunpack.c.l.b16 %v76
  %v163 = vunpack.c.l.b16 %v77
  %v164 = vunpack.c.l.b16 %v78
  %v165 = vunpack.c.l.b16 %v79
  %v166 = vunpack.c.l.b16 %v80
  %v167 = vunpack.c.l.b16 %v81
  %v168 = vunpack.c.l.b16 %v82
  %v169 = vunpack.c.l.b16 %v83
  %v170 = vunpack.c.l.b16 %v84
  %v171 = vunpack.c.l.b16 %v85
  %v172 = vunpack.c.l.b16 %v86
  %v173 = vunpack.c.l.b16 %v87
  %v174 = vunpack.c.l.b16 %v88
  %v175 = vunpack.c.l.b16 %v89
  %v176 = vunpack.c.l.b16 %v90
  %v177 = vpack.c.b16 %v146, %v145
  %v178 = vpack.c.b16 %v148, %v147
  %v179 = vpack.c.b16 %v150, %v149
  %v180 = vpack.c.b16 %v152, %v151
  %v181 = vpack.c.b16 %v154, %v153
  %v182 = vpack.c.b16 %v156, %v155
  %v183 = vpack.c.b16 %v158, %v157
  %v184 = vpack.c.b16 %v160, %v159
  %v185 = vpack.c.b16 %v162, %v161
  %v186 = vpack.c.b16 %v164, %v163
  %v187 = vpack.c.b16 %v166, %v165
  %v188 = vpack.c.b16 %v168, %v167
  %v189 = vpack.c.b16 %v170, %v169
  %v190 = vpack.c.b16 %v172, %v171
  %v191 = vpack.c.b16 %v174, %v173
  %v192 = vpack.c.b16 %v176, %v175
  %209 = vmatprep.subr.bf16.mxu0 0
  %210 = vmatpush1.bf16.msra.mxu0 %v184
  %211 = vmatprep.subr.bf16.mxu0 0
  %212 = vmatpush1.bf16.msra.mxu0 %v183
  %213 = vmatprep.subr.bf16.mxu0 0
  %214 = vmatpush1.bf16.msra.mxu0 %v182
  %215 = vmatprep.subr.bf16.mxu0 0
  %216 = vmatpush1.bf16.msra.mxu0 %v181
  %217 = vmatprep.subr.bf16.mxu0 0
  %218 = vmatpush1.bf16.msra.mxu0 %v180
  %219 = vmatprep.subr.bf16.mxu0 0
  %220 = vmatpush1.bf16.msra.mxu0 %v179
  %221 = vmatprep.subr.bf16.mxu0 0
  %222 = vmatpush1.bf16.msra.mxu0 %v178
  %223 = vmatprep.subr.bf16.mxu0 0
  %224 = vmatpush1.bf16.msra.mxu0 %v177
  %225 = vmatprep.subr.bf16.mxu0 0
  %226 = vmatpush2.bf16.msra.mxu0 %v192
  %227 = vmatprep.subr.bf16.mxu0 0
  %228 = vmatpush2.bf16.msra.mxu0 %v191
  %229 = vmatprep.subr.bf16.mxu0 0
  %230 = vmatpush2.bf16.msra.mxu0 %v190
  %231 = vmatprep.subr.bf16.mxu0 0
  %232 = vmatpush2.bf16.msra.mxu0 %v189
  %233 = vmatprep.subr.bf16.mxu0 0
  %234 = vmatpush2.bf16.msra.mxu0 %v188
  %235 = vmatprep.subr.bf16.mxu0 0
  %236 = vmatpush2.bf16.msra.mxu0 %v187
  %237 = vmatprep.subr.bf16.mxu0 0
  %238 = vmatpush2.bf16.msra.mxu0 %v186
  %239 = vmatprep.subr.bf16.mxu0 0
  %240 = vmatpush2.bf16.msra.mxu0 %v185
  %241 = vmatprep.mubr.bf16.mxu0 %v110
  %242 = vmatmul.mubr.bf16.gmra.mxu0 %v109
  %v243 = vpop.f32.mrf.mxu0
  %v244 = vadd.f32 %v96, %v243
  %v245 = vpop.f32.mrf.mxu0
  %v246 = vpop.f32.mrf.mxu0
  %v247 = vpop.f32.mrf.mxu0
  %248 = vdwg.mxu0
  %v249 = vmax.f32 %v244, 0.0
  %v250 = vpack.c.bf16 %v249, %v249
  %v251 = vld [vmem:[%s3] sm:$0xf]
  %v252 = vld [vmem:[%s3 + $0x4] sm:$0xf]
  %v253 = vld [vmem:[%s3 + $0x8] sm:$0xf]
  %v254 = vld [vmem:[%s3 + $0xc] sm:$0xf]
  %v255 = vld [vmem:[%s3 + $0x10] sm:$0xf]
  %v256 = vld [vmem:[%s3 + $0x14] sm:$0xf]
  %v257 = vld [vmem:[%s3 + $0x18] sm:$0xf]
  %v258 = vld [vmem:[%s3 + $0x1c] sm:$0xf]
  %v259 = vld [vmem:[%s3 + $0x20] sm:$0xf]
  %v260 = vld [vmem:[%s3 + $0x24] sm:$0xf]
  %v261 = vld [vmem:[%s3 + $0x28] sm:$0xf]
  %v262 = vld [vmem:[%s3 + $0x2c] sm:$0xf]
  %v263 = vld [vmem:[%s3 + $0x30] sm:$0xf]
  %v264 = vld [vmem:[%s3 + $0x34] sm:$0xf]
  %v265 = vld [vmem:[%s3 + $0x38] sm:$0xf]
  %v266 = vld [vmem:[%s3 + $0x3c] sm:$0xf]
  %v267 = vld [vmem:[%s4] sm:$0x1]
  %v269 = vlaneseq
  %v270 = vshrl.u32 %v269, 7
  %v271 = vsub.s32 0, %v270
  %v272 = vrot.slane %v267, %v271
  %v290 = vunpack.c.l.b16 %v251
  %v291 = vunpack.c.l.b16 %v252
  %v292 = vunpack.c.l.b16 %v253
  %v293 = vunpack.c.l.b16 %v254
  %v294 = vunpack.c.l.b16 %v255
  %v295 = vunpack.c.l.b16 %v256
  %v296 = vunpack.c.l.b16 %v257
  %v297 = vunpack.c.l.b16 %v258
  %v298 = vunpack.c.l.b16 %v259
  %v299 = vunpack.c.l.b16 %v260
  %v300 = vunpack.c.l.b16 %v261
  %v301 = vunpack.c.l.b16 %v262
  %v302 = vunpack.c.l.b16 %v263
  %v303 = vunpack.c.l.b16 %v264
  %v304 = vunpack.c.l.b16 %v265
  %v305 = vunpack.c.l.b16 %v266
  %v306 = vpack.c.b16 %v291, %v290
  %v307 = vpack.c.b16 %v293, %v292
  %v308 = vpack.c.b16 %v295, %v294
  %v309 = vpack.c.b16 %v297, %v296
  %v310 = vpack.c.b16 %v299, %v298
  %v311 = vpack.c.b16 %v301, %v300
  %v312 = vpack.c.b16 %v303, %v302
  %v313 = vpack.c.b16 %v305, %v304
  %322 = vmatprep.subr.bf16.mxu0 0
  %323 = vmatpush1.bf16.msra.mxu0 %v313
  %324 = vmatprep.subr.bf16.mxu0 0
  %325 = vmatpush1.bf16.msra.mxu0 %v312
  %326 = vmatprep.subr.bf16.mxu0 0
  %327 = vmatpush1.bf16.msra.mxu0 %v311
  %328 = vmatprep.subr.bf16.mxu0 0
  %329 = vmatpush1.bf16.msra.mxu0 %v310
  %330 = vmatprep.subr.bf16.mxu0 0
  %331 = vmatpush1.bf16.msra.mxu0 %v309
  %332 = vmatprep.subr.bf16.mxu0 0
  %333 = vmatpush1.bf16.msra.mxu0 %v308
  %334 = vmatprep.subr.bf16.mxu0 0
  %335 = vmatpush1.bf16.msra.mxu0 %v307
  %336 = vmatprep.subr.bf16.mxu0 0
  %337 = vmatpush1.bf16.msra.mxu0 %v306
  %338 = vmatprep.subr.bf16.mxu0 0
  %339 = vmatpush2.bf16.msra.mxu0 0
  %340 = vmatprep.subr.bf16.mxu0 0
  %341 = vmatpush2.bf16.msra.mxu0 0
  %342 = vmatprep.subr.bf16.mxu0 0
  %343 = vmatpush2.bf16.msra.mxu0 0
  %344 = vmatprep.subr.bf16.mxu0 0
  %345 = vmatpush2.bf16.msra.mxu0 0
  %346 = vmatprep.subr.bf16.mxu0 0
  %347 = vmatpush2.bf16.msra.mxu0 0
  %348 = vmatprep.subr.bf16.mxu0 0
  %349 = vmatpush2.bf16.msra.mxu0 0
  %350 = vmatprep.subr.bf16.mxu0 0
  %351 = vmatpush2.bf16.msra.mxu0 0
  %352 = vmatprep.subr.bf16.mxu0 0
  %353 = vmatpush2.bf16.msra.mxu0 0
  %354 = vmatprep.mubr.bf16.mxu0 0
  %355 = vmatmul.mubr.bf16.gmra.mxu0 %v250
  %v356 = vpop.f32.mrf.mxu0
  %v357 = vadd.f32 %v272, %v356
  %v358 = vpop.f32.mrf.mxu0
  %v359 = vpop.f32.mrf.mxu0
  %v360 = vpop.f32.mrf.mxu0
  %361 = vdwg.mxu0
  %s362 = scalar_lea.vmem %s0, 16
  %v363 = vld [vmem:[%s362] sm:$0xff]
  %v364 = vld [vmem:[%s362 + $0x8] sm:$0xff]
  %v365 = vunpack.c.l.bf16 %v363
  %v366 = vunpack.c.h.bf16 %v363
  %v367 = vunpack.c.l.bf16 %v364
  %v368 = vunpack.c.h.bf16 %v364
  %v369 = vrot.slane %v365, 4
  %v370 = vadd.f32 %v365, %v369
  %v371 = vrot.slane %v370, 2
  %v372 = vadd.f32 %v370, %v371
  %v373 = vrot.slane %v372, 1
  %v374 = vadd.f32 %v372, %v373
  %v375 = vrot.slane %v366, 4
  %v376 = vadd.f32 %v366, %v375
  %v377 = vrot.slane %v376, 2
  %v378 = vadd.f32 %v376, %v377
  %v379 = vrot.slane %v378, 1
  %v380 = vadd.f32 %v378, %v379
  %v381 = vrot.slane %v367, 4
  %v382 = vadd.f32 %v367, %v381
  %v383 = vrot.slane %v382, 2
  %v384 = vadd.f32 %v382, %v383
  %v385 = vrot.slane %v384, 1
  %v386 = vadd.f32 %v384, %v385
  %v387 = vrot.slane %v368, 4
  %v388 = vadd.f32 %v368, %v387
  %v389 = vrot.slane %v388, 2
  %v390 = vadd.f32 %v388, %v389
  %v391 = vrot.slane %v390, 1
  %v392 = vadd.f32 %v390, %v391
  %v393 = vmul.f32 %v374, 0.125
  %v394 = vmul.f32 %v380, 0.125
  %v395 = vmul.f32 %v386, 0.125
  %v396 = vmul.f32 %v392, 0.125
  %v397 = vpack.c.bf16 %v393, %v393
  %v398 = vpack.c.bf16 %v394, %v394
  %v399 = vpack.c.bf16 %v395, %v395
  %v400 = vpack.c.bf16 %v396, %v396
  %s401 = scalar_lea.vmem %s1, 128
  %v402 = vld [vmem:[%s401] sm:$0xf]
  %v403 = vld [vmem:[%s401 + $0x4] sm:$0xf]
  %v404 = vld [vmem:[%s401 + $0x8] sm:$0xf]
  %v405 = vld [vmem:[%s401 + $0xc] sm:$0xf]
  %v406 = vld [vmem:[%s401 + $0x10] sm:$0xf]
  %v407 = vld [vmem:[%s401 + $0x14] sm:$0xf]
  %v408 = vld [vmem:[%s401 + $0x18] sm:$0xf]
  %v409 = vld [vmem:[%s401 + $0x1c] sm:$0xf]
  %v410 = vld [vmem:[%s401 + $0x20] sm:$0xf]
  %v411 = vld [vmem:[%s401 + $0x24] sm:$0xf]
  %v412 = vld [vmem:[%s401 + $0x28] sm:$0xf]
  %v413 = vld [vmem:[%s401 + $0x2c] sm:$0xf]
  %v414 = vld [vmem:[%s401 + $0x30] sm:$0xf]
  %v415 = vld [vmem:[%s401 + $0x34] sm:$0xf]
  %v416 = vld [vmem:[%s401 + $0x38] sm:$0xf]
  %v417 = vld [vmem:[%s401 + $0x3c] sm:$0xf]
  %v418 = vld [vmem:[%s401 + $0x40] sm:$0xf]
  %v419 = vld [vmem:[%s401 + $0x44] sm:$0xf]
  %v420 = vld [vmem:[%s401 + $0x48] sm:$0xf]
  %v421 = vld [vmem:[%s401 + $0x4c] sm:$0xf]
  %v422 = vld [vmem:[%s401 + $0x50] sm:$0xf]
  %v423 = vld [vmem:[%s401 + $0x54] sm:$0xf]
  %v424 = vld [vmem:[%s401 + $0x58] sm:$0xf]
  %v425 = vld [vmem:[%s401 + $0x5c] sm:$0xf]
  %v426 = vld [vmem:[%s401 + $0x60] sm:$0xf]
  %v427 = vld [vmem:[%s401 + $0x64] sm:$0xf]
  %v428 = vld [vmem:[%s401 + $0x68] sm:$0xf]
  %v429 = vld [vmem:[%s401 + $0x6c] sm:$0xf]
  %v430 = vld [vmem:[%s401 + $0x70] sm:$0xf]
  %v431 = vld [vmem:[%s401 + $0x74] sm:$0xf]
  %v432 = vld [vmem:[%s401 + $0x78] sm:$0xf]
  %v433 = vld [vmem:[%s401 + $0x7c] sm:$0xf]
  %s434 = scalar_lea.vmem %s2, 1
  %v435 = vld [vmem:[%s434] sm:$0x1]
  %v437 = vlaneseq
  %v438 = vshrl.u32 %v437, 7
  %v439 = vsub.s32 0, %v438
  %v440 = vrot.slane %v435, %v439
  %v446 = vunpack.c.l.b16 %v397
  %v447 = vunpack.c.l.b16 %v398
  %v448 = vunpack.c.l.b16 %v399
  %v449 = vunpack.c.l.b16 %v400
  %v450 = vsel %vm106, %v448, %v446
  %v451 = vsel %vm106, %v449, %v447
  %v452 = vpack.c.b16 %v450, %v450
  %v453 = vpack.c.b16 %v451, %v451
  %v488 = vunpack.c.l.b16 %v402
  %v489 = vunpack.c.l.b16 %v403
  %v490 = vunpack.c.l.b16 %v404
  %v491 = vunpack.c.l.b16 %v405
  %v492 = vunpack.c.l.b16 %v406
  %v493 = vunpack.c.l.b16 %v407
  %v494 = vunpack.c.l.b16 %v408
  %v495 = vunpack.c.l.b16 %v409
  %v496 = vunpack.c.l.b16 %v410
  %v497 = vunpack.c.l.b16 %v411
  %v498 = vunpack.c.l.b16 %v412
  %v499 = vunpack.c.l.b16 %v413
  %v500 = vunpack.c.l.b16 %v414
  %v501 = vunpack.c.l.b16 %v415
  %v502 = vunpack.c.l.b16 %v416
  %v503 = vunpack.c.l.b16 %v417
  %v504 = vunpack.c.l.b16 %v418
  %v505 = vunpack.c.l.b16 %v419
  %v506 = vunpack.c.l.b16 %v420
  %v507 = vunpack.c.l.b16 %v421
  %v508 = vunpack.c.l.b16 %v422
  %v509 = vunpack.c.l.b16 %v423
  %v510 = vunpack.c.l.b16 %v424
  %v511 = vunpack.c.l.b16 %v425
  %v512 = vunpack.c.l.b16 %v426
  %v513 = vunpack.c.l.b16 %v427
  %v514 = vunpack.c.l.b16 %v428
  %v515 = vunpack.c.l.b16 %v429
  %v516 = vunpack.c.l.b16 %v430
  %v517 = vunpack.c.l.b16 %v431
  %v518 = vunpack.c.l.b16 %v432
  %v519 = vunpack.c.l.b16 %v433
  %v520 = vpack.c.b16 %v489, %v488
  %v521 = vpack.c.b16 %v491, %v490
  %v522 = vpack.c.b16 %v493, %v492
  %v523 = vpack.c.b16 %v495, %v494
  %v524 = vpack.c.b16 %v497, %v496
  %v525 = vpack.c.b16 %v499, %v498
  %v526 = vpack.c.b16 %v501, %v500
  %v527 = vpack.c.b16 %v503, %v502
  %v528 = vpack.c.b16 %v505, %v504
  %v529 = vpack.c.b16 %v507, %v506
  %v530 = vpack.c.b16 %v509, %v508
  %v531 = vpack.c.b16 %v511, %v510
  %v532 = vpack.c.b16 %v513, %v512
  %v533 = vpack.c.b16 %v515, %v514
  %v534 = vpack.c.b16 %v517, %v516
  %v535 = vpack.c.b16 %v519, %v518
  %552 = vmatprep.subr.bf16.mxu0 0
  %553 = vmatpush1.bf16.msra.mxu0 %v527
  %554 = vmatprep.subr.bf16.mxu0 0
  %555 = vmatpush1.bf16.msra.mxu0 %v526
  %556 = vmatprep.subr.bf16.mxu0 0
  %557 = vmatpush1.bf16.msra.mxu0 %v525
  %558 = vmatprep.subr.bf16.mxu0 0
  %559 = vmatpush1.bf16.msra.mxu0 %v524
  %560 = vmatprep.subr.bf16.mxu0 0
  %561 = vmatpush1.bf16.msra.mxu0 %v523
  %562 = vmatprep.subr.bf16.mxu0 0
  %563 = vmatpush1.bf16.msra.mxu0 %v522
  %564 = vmatprep.subr.bf16.mxu0 0
  %565 = vmatpush1.bf16.msra.mxu0 %v521
  %566 = vmatprep.subr.bf16.mxu0 0
  %567 = vmatpush1.bf16.msra.mxu0 %v520
  %568 = vmatprep.subr.bf16.mxu0 0
  %569 = vmatpush2.bf16.msra.mxu0 %v535
  %570 = vmatprep.subr.bf16.mxu0 0
  %571 = vmatpush2.bf16.msra.mxu0 %v534
  %572 = vmatprep.subr.bf16.mxu0 0
  %573 = vmatpush2.bf16.msra.mxu0 %v533
  %574 = vmatprep.subr.bf16.mxu0 0
  %575 = vmatpush2.bf16.msra.mxu0 %v532
  %576 = vmatprep.subr.bf16.mxu0 0
  %577 = vmatpush2.bf16.msra.mxu0 %v531
  %578 = vmatprep.subr.bf16.mxu0 0
  %579 = vmatpush2.bf16.msra.mxu0 %v530
  %580 = vmatprep.subr.bf16.mxu0 0
  %581 = vmatpush2.bf16.msra.mxu0 %v529
  %582 = vmatprep.subr.bf16.mxu0 0
  %583 = vmatpush2.bf16.msra.mxu0 %v528
  %584 = vmatprep.mubr.bf16.mxu0 %v453
  %585 = vmatmul.mubr.bf16.gmra.mxu0 %v452
  %v586 = vpop.f32.mrf.mxu0
  %v587 = vadd.f32 %v440, %v586
  %v588 = vpop.f32.mrf.mxu0
  %v589 = vpop.f32.mrf.mxu0
  %v590 = vpop.f32.mrf.mxu0
  %591 = vdwg.mxu0
  %v592 = vmax.f32 %v587, 0.0
  %v593 = vpack.c.bf16 %v592, %v592
  %s594 = scalar_lea.vmem %s3, 64
  %v595 = vld [vmem:[%s594] sm:$0xf]
  %v596 = vld [vmem:[%s594 + $0x4] sm:$0xf]
  %v597 = vld [vmem:[%s594 + $0x8] sm:$0xf]
  %v598 = vld [vmem:[%s594 + $0xc] sm:$0xf]
  %v599 = vld [vmem:[%s594 + $0x10] sm:$0xf]
  %v600 = vld [vmem:[%s594 + $0x14] sm:$0xf]
  %v601 = vld [vmem:[%s594 + $0x18] sm:$0xf]
  %v602 = vld [vmem:[%s594 + $0x1c] sm:$0xf]
  %v603 = vld [vmem:[%s594 + $0x20] sm:$0xf]
  %v604 = vld [vmem:[%s594 + $0x24] sm:$0xf]
  %v605 = vld [vmem:[%s594 + $0x28] sm:$0xf]
  %v606 = vld [vmem:[%s594 + $0x2c] sm:$0xf]
  %v607 = vld [vmem:[%s594 + $0x30] sm:$0xf]
  %v608 = vld [vmem:[%s594 + $0x34] sm:$0xf]
  %v609 = vld [vmem:[%s594 + $0x38] sm:$0xf]
  %v610 = vld [vmem:[%s594 + $0x3c] sm:$0xf]
  %s611 = scalar_lea.vmem %s4, 1
  %v612 = vld [vmem:[%s611] sm:$0x1]
  %v614 = vlaneseq
  %v615 = vshrl.u32 %v614, 7
  %v616 = vsub.s32 0, %v615
  %v617 = vrot.slane %v612, %v616
  %v635 = vunpack.c.l.b16 %v595
  %v636 = vunpack.c.l.b16 %v596
  %v637 = vunpack.c.l.b16 %v597
  %v638 = vunpack.c.l.b16 %v598
  %v639 = vunpack.c.l.b16 %v599
  %v640 = vunpack.c.l.b16 %v600
  %v641 = vunpack.c.l.b16 %v601
  %v642 = vunpack.c.l.b16 %v602
  %v643 = vunpack.c.l.b16 %v603
  %v644 = vunpack.c.l.b16 %v604
  %v645 = vunpack.c.l.b16 %v605
  %v646 = vunpack.c.l.b16 %v606
  %v647 = vunpack.c.l.b16 %v607
  %v648 = vunpack.c.l.b16 %v608
  %v649 = vunpack.c.l.b16 %v609
  %v650 = vunpack.c.l.b16 %v610
  %v651 = vpack.c.b16 %v636, %v635
  %v652 = vpack.c.b16 %v638, %v637
  %v653 = vpack.c.b16 %v640, %v639
  %v654 = vpack.c.b16 %v642, %v641
  %v655 = vpack.c.b16 %v644, %v643
  %v656 = vpack.c.b16 %v646, %v645
  %v657 = vpack.c.b16 %v648, %v647
  %v658 = vpack.c.b16 %v650, %v649
  %667 = vmatprep.subr.bf16.mxu0 0
  %668 = vmatpush1.bf16.msra.mxu0 %v658
  %669 = vmatprep.subr.bf16.mxu0 0
  %670 = vmatpush1.bf16.msra.mxu0 %v657
  %671 = vmatprep.subr.bf16.mxu0 0
  %672 = vmatpush1.bf16.msra.mxu0 %v656
  %673 = vmatprep.subr.bf16.mxu0 0
  %674 = vmatpush1.bf16.msra.mxu0 %v655
  %675 = vmatprep.subr.bf16.mxu0 0
  %676 = vmatpush1.bf16.msra.mxu0 %v654
  %677 = vmatprep.subr.bf16.mxu0 0
  %678 = vmatpush1.bf16.msra.mxu0 %v653
  %679 = vmatprep.subr.bf16.mxu0 0
  %680 = vmatpush1.bf16.msra.mxu0 %v652
  %681 = vmatprep.subr.bf16.mxu0 0
  %682 = vmatpush1.bf16.msra.mxu0 %v651
  %683 = vmatprep.subr.bf16.mxu0 0
  %684 = vmatpush2.bf16.msra.mxu0 0
  %685 = vmatprep.subr.bf16.mxu0 0
  %686 = vmatpush2.bf16.msra.mxu0 0
  %687 = vmatprep.subr.bf16.mxu0 0
  %688 = vmatpush2.bf16.msra.mxu0 0
  %689 = vmatprep.subr.bf16.mxu0 0
  %690 = vmatpush2.bf16.msra.mxu0 0
  %691 = vmatprep.subr.bf16.mxu0 0
  %692 = vmatpush2.bf16.msra.mxu0 0
  %693 = vmatprep.subr.bf16.mxu0 0
  %694 = vmatpush2.bf16.msra.mxu0 0
  %695 = vmatprep.subr.bf16.mxu0 0
  %696 = vmatpush2.bf16.msra.mxu0 0
  %697 = vmatprep.subr.bf16.mxu0 0
  %698 = vmatpush2.bf16.msra.mxu0 0
  %699 = vmatprep.mubr.bf16.mxu0 0
  %700 = vmatmul.mubr.bf16.gmra.mxu0 %v593
  %v701 = vpop.f32.mrf.mxu0
  %v702 = vadd.f32 %v617, %v701
  %v703 = vpop.f32.mrf.mxu0
  %v704 = vpop.f32.mrf.mxu0
  %v705 = vpop.f32.mrf.mxu0
  %706 = vdwg.mxu0
  %s707 = scalar_lea.vmem %s0, 32
  %v708 = vld [vmem:[%s707] sm:$0xff]
  %v709 = vld [vmem:[%s707 + $0x8] sm:$0xff]
  %v710 = vunpack.c.l.bf16 %v708
  %v711 = vunpack.c.h.bf16 %v708
  %v712 = vunpack.c.l.bf16 %v709
  %v713 = vunpack.c.h.bf16 %v709
  %v714 = vrot.slane %v710, 4
  %v715 = vadd.f32 %v710, %v714
  %v716 = vrot.slane %v715, 2
  %v717 = vadd.f32 %v715, %v716
  %v718 = vrot.slane %v717, 1
  %v719 = vadd.f32 %v717, %v718
  %v720 = vrot.slane %v711, 4
  %v721 = vadd.f32 %v711, %v720
  %v722 = vrot.slane %v721, 2
  %v723 = vadd.f32 %v721, %v722
  %v724 = vrot.slane %v723, 1
  %v725 = vadd.f32 %v723, %v724
  %v726 = vrot.slane %v712, 4
  %v727 = vadd.f32 %v712, %v726
  %v728 = vrot.slane %v727, 2
  %v729 = vadd.f32 %v727, %v728
  %v730 = vrot.slane %v729, 1
  %v731 = vadd.f32 %v729, %v730
  %v732 = vrot.slane %v713, 4
  %v733 = vadd.f32 %v713, %v732
  %v734 = vrot.slane %v733, 2
  %v735 = vadd.f32 %v733, %v734
  %v736 = vrot.slane %v735, 1
  %v737 = vadd.f32 %v735, %v736
  %v738 = vmul.f32 %v719, 0.125
  %v739 = vmul.f32 %v725, 0.125
  %v740 = vmul.f32 %v731, 0.125
  %v741 = vmul.f32 %v737, 0.125
  %v742 = vpack.c.bf16 %v738, %v738
  %v743 = vpack.c.bf16 %v739, %v739
  %v744 = vpack.c.bf16 %v740, %v740
  %v745 = vpack.c.bf16 %v741, %v741
  %s746 = scalar_lea.vmem %s1, 256
  %v747 = vld [vmem:[%s746] sm:$0xf]
  %v748 = vld [vmem:[%s746 + $0x4] sm:$0xf]
  %v749 = vld [vmem:[%s746 + $0x8] sm:$0xf]
  %v750 = vld [vmem:[%s746 + $0xc] sm:$0xf]
  %v751 = vld [vmem:[%s746 + $0x10] sm:$0xf]
  %v752 = vld [vmem:[%s746 + $0x14] sm:$0xf]
  %v753 = vld [vmem:[%s746 + $0x18] sm:$0xf]
  %v754 = vld [vmem:[%s746 + $0x1c] sm:$0xf]
  %v755 = vld [vmem:[%s746 + $0x20] sm:$0xf]
  %v756 = vld [vmem:[%s746 + $0x24] sm:$0xf]
  %v757 = vld [vmem:[%s746 + $0x28] sm:$0xf]
  %v758 = vld [vmem:[%s746 + $0x2c] sm:$0xf]
  %v759 = vld [vmem:[%s746 + $0x30] sm:$0xf]
  %v760 = vld [vmem:[%s746 + $0x34] sm:$0xf]
  %v761 = vld [vmem:[%s746 + $0x38] sm:$0xf]
  %v762 = vld [vmem:[%s746 + $0x3c] sm:$0xf]
  %v763 = vld [vmem:[%s746 + $0x40] sm:$0xf]
  %v764 = vld [vmem:[%s746 + $0x44] sm:$0xf]
  %v765 = vld [vmem:[%s746 + $0x48] sm:$0xf]
  %v766 = vld [vmem:[%s746 + $0x4c] sm:$0xf]
  %v767 = vld [vmem:[%s746 + $0x50] sm:$0xf]
  %v768 = vld [vmem:[%s746 + $0x54] sm:$0xf]
  %v769 = vld [vmem:[%s746 + $0x58] sm:$0xf]
  %v770 = vld [vmem:[%s746 + $0x5c] sm:$0xf]
  %v771 = vld [vmem:[%s746 + $0x60] sm:$0xf]
  %v772 = vld [vmem:[%s746 + $0x64] sm:$0xf]
  %v773 = vld [vmem:[%s746 + $0x68] sm:$0xf]
  %v774 = vld [vmem:[%s746 + $0x6c] sm:$0xf]
  %v775 = vld [vmem:[%s746 + $0x70] sm:$0xf]
  %v776 = vld [vmem:[%s746 + $0x74] sm:$0xf]
  %v777 = vld [vmem:[%s746 + $0x78] sm:$0xf]
  %v778 = vld [vmem:[%s746 + $0x7c] sm:$0xf]
  %s779 = scalar_lea.vmem %s2, 2
  %v780 = vld [vmem:[%s779] sm:$0x1]
  %v782 = vlaneseq
  %v783 = vshrl.u32 %v782, 7
  %v784 = vsub.s32 0, %v783
  %v785 = vrot.slane %v780, %v784
  %v791 = vunpack.c.l.b16 %v742
  %v792 = vunpack.c.l.b16 %v743
  %v793 = vunpack.c.l.b16 %v744
  %v794 = vunpack.c.l.b16 %v745
  %v795 = vsel %vm106, %v793, %v791
  %v796 = vsel %vm106, %v794, %v792
  %v797 = vpack.c.b16 %v795, %v795
  %v798 = vpack.c.b16 %v796, %v796
  %v833 = vunpack.c.l.b16 %v747
  %v834 = vunpack.c.l.b16 %v748
  %v835 = vunpack.c.l.b16 %v749
  %v836 = vunpack.c.l.b16 %v750
  %v837 = vunpack.c.l.b16 %v751
  %v838 = vunpack.c.l.b16 %v752
  %v839 = vunpack.c.l.b16 %v753
  %v840 = vunpack.c.l.b16 %v754
  %v841 = vunpack.c.l.b16 %v755
  %v842 = vunpack.c.l.b16 %v756
  %v843 = vunpack.c.l.b16 %v757
  %v844 = vunpack.c.l.b16 %v758
  %v845 = vunpack.c.l.b16 %v759
  %v846 = vunpack.c.l.b16 %v760
  %v847 = vunpack.c.l.b16 %v761
  %v848 = vunpack.c.l.b16 %v762
  %v849 = vunpack.c.l.b16 %v763
  %v850 = vunpack.c.l.b16 %v764
  %v851 = vunpack.c.l.b16 %v765
  %v852 = vunpack.c.l.b16 %v766
  %v853 = vunpack.c.l.b16 %v767
  %v854 = vunpack.c.l.b16 %v768
  %v855 = vunpack.c.l.b16 %v769
  %v856 = vunpack.c.l.b16 %v770
  %v857 = vunpack.c.l.b16 %v771
  %v858 = vunpack.c.l.b16 %v772
  %v859 = vunpack.c.l.b16 %v773
  %v860 = vunpack.c.l.b16 %v774
  %v861 = vunpack.c.l.b16 %v775
  %v862 = vunpack.c.l.b16 %v776
  %v863 = vunpack.c.l.b16 %v777
  %v864 = vunpack.c.l.b16 %v778
  %v865 = vpack.c.b16 %v834, %v833
  %v866 = vpack.c.b16 %v836, %v835
  %v867 = vpack.c.b16 %v838, %v837
  %v868 = vpack.c.b16 %v840, %v839
  %v869 = vpack.c.b16 %v842, %v841
  %v870 = vpack.c.b16 %v844, %v843
  %v871 = vpack.c.b16 %v846, %v845
  %v872 = vpack.c.b16 %v848, %v847
  %v873 = vpack.c.b16 %v850, %v849
  %v874 = vpack.c.b16 %v852, %v851
  %v875 = vpack.c.b16 %v854, %v853
  %v876 = vpack.c.b16 %v856, %v855
  %v877 = vpack.c.b16 %v858, %v857
  %v878 = vpack.c.b16 %v860, %v859
  %v879 = vpack.c.b16 %v862, %v861
  %v880 = vpack.c.b16 %v864, %v863
  %897 = vmatprep.subr.bf16.mxu0 0
  %898 = vmatpush1.bf16.msra.mxu0 %v872
  %899 = vmatprep.subr.bf16.mxu0 0
  %900 = vmatpush1.bf16.msra.mxu0 %v871
  %901 = vmatprep.subr.bf16.mxu0 0
  %902 = vmatpush1.bf16.msra.mxu0 %v870
  %903 = vmatprep.subr.bf16.mxu0 0
  %904 = vmatpush1.bf16.msra.mxu0 %v869
  %905 = vmatprep.subr.bf16.mxu0 0
  %906 = vmatpush1.bf16.msra.mxu0 %v868
  %907 = vmatprep.subr.bf16.mxu0 0
  %908 = vmatpush1.bf16.msra.mxu0 %v867
  %909 = vmatprep.subr.bf16.mxu0 0
  %910 = vmatpush1.bf16.msra.mxu0 %v866
  %911 = vmatprep.subr.bf16.mxu0 0
  %912 = vmatpush1.bf16.msra.mxu0 %v865
  %913 = vmatprep.subr.bf16.mxu0 0
  %914 = vmatpush2.bf16.msra.mxu0 %v880
  %915 = vmatprep.subr.bf16.mxu0 0
  %916 = vmatpush2.bf16.msra.mxu0 %v879
  %917 = vmatprep.subr.bf16.mxu0 0
  %918 = vmatpush2.bf16.msra.mxu0 %v878
  %919 = vmatprep.subr.bf16.mxu0 0
  %920 = vmatpush2.bf16.msra.mxu0 %v877
  %921 = vmatprep.subr.bf16.mxu0 0
  %922 = vmatpush2.bf16.msra.mxu0 %v876
  %923 = vmatprep.subr.bf16.mxu0 0
  %924 = vmatpush2.bf16.msra.mxu0 %v875
  %925 = vmatprep.subr.bf16.mxu0 0
  %926 = vmatpush2.bf16.msra.mxu0 %v874
  %927 = vmatprep.subr.bf16.mxu0 0
  %928 = vmatpush2.bf16.msra.mxu0 %v873
  %929 = vmatprep.mubr.bf16.mxu0 %v798
  %930 = vmatmul.mubr.bf16.gmra.mxu0 %v797
  %v931 = vpop.f32.mrf.mxu0
  %v932 = vadd.f32 %v785, %v931
  %v933 = vpop.f32.mrf.mxu0
  %v934 = vpop.f32.mrf.mxu0
  %v935 = vpop.f32.mrf.mxu0
  %936 = vdwg.mxu0
  %v937 = vmax.f32 %v932, 0.0
  %v938 = vpack.c.bf16 %v937, %v937
  %s939 = scalar_lea.vmem %s3, 128
  %v940 = vld [vmem:[%s939] sm:$0xf]
  %v941 = vld [vmem:[%s939 + $0x4] sm:$0xf]
  %v942 = vld [vmem:[%s939 + $0x8] sm:$0xf]
  %v943 = vld [vmem:[%s939 + $0xc] sm:$0xf]
  %v944 = vld [vmem:[%s939 + $0x10] sm:$0xf]
  %v945 = vld [vmem:[%s939 + $0x14] sm:$0xf]
  %v946 = vld [vmem:[%s939 + $0x18] sm:$0xf]
  %v947 = vld [vmem:[%s939 + $0x1c] sm:$0xf]
  %v948 = vld [vmem:[%s939 + $0x20] sm:$0xf]
  %v949 = vld [vmem:[%s939 + $0x24] sm:$0xf]
  %v950 = vld [vmem:[%s939 + $0x28] sm:$0xf]
  %v951 = vld [vmem:[%s939 + $0x2c] sm:$0xf]
  %v952 = vld [vmem:[%s939 + $0x30] sm:$0xf]
  %v953 = vld [vmem:[%s939 + $0x34] sm:$0xf]
  %v954 = vld [vmem:[%s939 + $0x38] sm:$0xf]
  %v955 = vld [vmem:[%s939 + $0x3c] sm:$0xf]
  %s956 = scalar_lea.vmem %s4, 2
  %v957 = vld [vmem:[%s956] sm:$0x1]
  %v959 = vlaneseq
  %v960 = vshrl.u32 %v959, 7
  %v961 = vsub.s32 0, %v960
  %v962 = vrot.slane %v957, %v961
  %v980 = vunpack.c.l.b16 %v940
  %v981 = vunpack.c.l.b16 %v941
  %v982 = vunpack.c.l.b16 %v942
  %v983 = vunpack.c.l.b16 %v943
  %v984 = vunpack.c.l.b16 %v944
  %v985 = vunpack.c.l.b16 %v945
  %v986 = vunpack.c.l.b16 %v946
  %v987 = vunpack.c.l.b16 %v947
  %v988 = vunpack.c.l.b16 %v948
  %v989 = vunpack.c.l.b16 %v949
  %v990 = vunpack.c.l.b16 %v950
  %v991 = vunpack.c.l.b16 %v951
  %v992 = vunpack.c.l.b16 %v952
  %v993 = vunpack.c.l.b16 %v953
  %v994 = vunpack.c.l.b16 %v954
  %v995 = vunpack.c.l.b16 %v955
  %v996 = vpack.c.b16 %v981, %v980
  %v997 = vpack.c.b16 %v983, %v982
  %v998 = vpack.c.b16 %v985, %v984
  %v999 = vpack.c.b16 %v987, %v986
  %v1000 = vpack.c.b16 %v989, %v988
  %v1001 = vpack.c.b16 %v991, %v990
  %v1002 = vpack.c.b16 %v993, %v992
  %v1003 = vpack.c.b16 %v995, %v994
  %1012 = vmatprep.subr.bf16.mxu0 0
  %1013 = vmatpush1.bf16.msra.mxu0 %v1003
  %1014 = vmatprep.subr.bf16.mxu0 0
  %1015 = vmatpush1.bf16.msra.mxu0 %v1002
  %1016 = vmatprep.subr.bf16.mxu0 0
  %1017 = vmatpush1.bf16.msra.mxu0 %v1001
  %1018 = vmatprep.subr.bf16.mxu0 0
  %1019 = vmatpush1.bf16.msra.mxu0 %v1000
  %1020 = vmatprep.subr.bf16.mxu0 0
  %1021 = vmatpush1.bf16.msra.mxu0 %v999
  %1022 = vmatprep.subr.bf16.mxu0 0
  %1023 = vmatpush1.bf16.msra.mxu0 %v998
  %1024 = vmatprep.subr.bf16.mxu0 0
  %1025 = vmatpush1.bf16.msra.mxu0 %v997
  %1026 = vmatprep.subr.bf16.mxu0 0
  %1027 = vmatpush1.bf16.msra.mxu0 %v996
  %1028 = vmatprep.subr.bf16.mxu0 0
  %1029 = vmatpush2.bf16.msra.mxu0 0
  %1030 = vmatprep.subr.bf16.mxu0 0
  %1031 = vmatpush2.bf16.msra.mxu0 0
  %1032 = vmatprep.subr.bf16.mxu0 0
  %1033 = vmatpush2.bf16.msra.mxu0 0
  %1034 = vmatprep.subr.bf16.mxu0 0
  %1035 = vmatpush2.bf16.msra.mxu0 0
  %1036 = vmatprep.subr.bf16.mxu0 0
  %1037 = vmatpush2.bf16.msra.mxu0 0
  %1038 = vmatprep.subr.bf16.mxu0 0
  %1039 = vmatpush2.bf16.msra.mxu0 0
  %1040 = vmatprep.subr.bf16.mxu0 0
  %1041 = vmatpush2.bf16.msra.mxu0 0
  %1042 = vmatprep.subr.bf16.mxu0 0
  %1043 = vmatpush2.bf16.msra.mxu0 0
  %1044 = vmatprep.mubr.bf16.mxu0 0
  %1045 = vmatmul.mubr.bf16.gmra.mxu0 %v938
  %v1046 = vpop.f32.mrf.mxu0
  %v1047 = vadd.f32 %v962, %v1046
  %v1048 = vpop.f32.mrf.mxu0
  %v1049 = vpop.f32.mrf.mxu0
  %v1050 = vpop.f32.mrf.mxu0
  %1051 = vdwg.mxu0
  %s1052 = scalar_lea.vmem %s0, 48
  %v1053 = vld [vmem:[%s1052] sm:$0xff]
  %v1054 = vld [vmem:[%s1052 + $0x8] sm:$0xff]
  %v1055 = vunpack.c.l.bf16 %v1053
  %v1056 = vunpack.c.h.bf16 %v1053
  %v1057 = vunpack.c.l.bf16 %v1054
  %v1058 = vunpack.c.h.bf16 %v1054
  %v1059 = vrot.slane %v1055, 4
  %v1060 = vadd.f32 %v1055, %v1059
  %v1061 = vrot.slane %v1060, 2
  %v1062 = vadd.f32 %v1060, %v1061
  %v1063 = vrot.slane %v1062, 1
  %v1064 = vadd.f32 %v1062, %v1063
  %v1065 = vrot.slane %v1056, 4
  %v1066 = vadd.f32 %v1056, %v1065
  %v1067 = vrot.slane %v1066, 2
  %v1068 = vadd.f32 %v1066, %v1067
  %v1069 = vrot.slane %v1068, 1
  %v1070 = vadd.f32 %v1068, %v1069
  %v1071 = vrot.slane %v1057, 4
  %v1072 = vadd.f32 %v1057, %v1071
  %v1073 = vrot.slane %v1072, 2
  %v1074 = vadd.f32 %v1072, %v1073
  %v1075 = vrot.slane %v1074, 1
  %v1076 = vadd.f32 %v1074, %v1075
  %v1077 = vrot.slane %v1058, 4
  %v1078 = vadd.f32 %v1058, %v1077
  %v1079 = vrot.slane %v1078, 2
  %v1080 = vadd.f32 %v1078, %v1079
  %v1081 = vrot.slane %v1080, 1
  %v1082 = vadd.f32 %v1080, %v1081
  %v1083 = vmul.f32 %v1064, 0.125
  %v1084 = vmul.f32 %v1070, 0.125
  %v1085 = vmul.f32 %v1076, 0.125
  %v1086 = vmul.f32 %v1082, 0.125
  %v1087 = vpack.c.bf16 %v1083, %v1083
  %v1088 = vpack.c.bf16 %v1084, %v1084
  %v1089 = vpack.c.bf16 %v1085, %v1085
  %v1090 = vpack.c.bf16 %v1086, %v1086
  %s1091 = scalar_lea.vmem %s1, 384
  %v1092 = vld [vmem:[%s1091] sm:$0xf]
  %v1093 = vld [vmem:[%s1091 + $0x4] sm:$0xf]
  %v1094 = vld [vmem:[%s1091 + $0x8] sm:$0xf]
  %v1095 = vld [vmem:[%s1091 + $0xc] sm:$0xf]
  %v1096 = vld [vmem:[%s1091 + $0x10] sm:$0xf]
  %v1097 = vld [vmem:[%s1091 + $0x14] sm:$0xf]
  %v1098 = vld [vmem:[%s1091 + $0x18] sm:$0xf]
  %v1099 = vld [vmem:[%s1091 + $0x1c] sm:$0xf]
  %v1100 = vld [vmem:[%s1091 + $0x20] sm:$0xf]
  %v1101 = vld [vmem:[%s1091 + $0x24] sm:$0xf]
  %v1102 = vld [vmem:[%s1091 + $0x28] sm:$0xf]
  %v1103 = vld [vmem:[%s1091 + $0x2c] sm:$0xf]
  %v1104 = vld [vmem:[%s1091 + $0x30] sm:$0xf]
  %v1105 = vld [vmem:[%s1091 + $0x34] sm:$0xf]
  %v1106 = vld [vmem:[%s1091 + $0x38] sm:$0xf]
  %v1107 = vld [vmem:[%s1091 + $0x3c] sm:$0xf]
  %v1108 = vld [vmem:[%s1091 + $0x40] sm:$0xf]
  %v1109 = vld [vmem:[%s1091 + $0x44] sm:$0xf]
  %v1110 = vld [vmem:[%s1091 + $0x48] sm:$0xf]
  %v1111 = vld [vmem:[%s1091 + $0x4c] sm:$0xf]
  %v1112 = vld [vmem:[%s1091 + $0x50] sm:$0xf]
  %v1113 = vld [vmem:[%s1091 + $0x54] sm:$0xf]
  %v1114 = vld [vmem:[%s1091 + $0x58] sm:$0xf]
  %v1115 = vld [vmem:[%s1091 + $0x5c] sm:$0xf]
  %v1116 = vld [vmem:[%s1091 + $0x60] sm:$0xf]
  %v1117 = vld [vmem:[%s1091 + $0x64] sm:$0xf]
  %v1118 = vld [vmem:[%s1091 + $0x68] sm:$0xf]
  %v1119 = vld [vmem:[%s1091 + $0x6c] sm:$0xf]
  %v1120 = vld [vmem:[%s1091 + $0x70] sm:$0xf]
  %v1121 = vld [vmem:[%s1091 + $0x74] sm:$0xf]
  %v1122 = vld [vmem:[%s1091 + $0x78] sm:$0xf]
  %v1123 = vld [vmem:[%s1091 + $0x7c] sm:$0xf]
  %s1124 = scalar_lea.vmem %s2, 3
  %v1125 = vld [vmem:[%s1124] sm:$0x1]
  %v1127 = vlaneseq
  %v1128 = vshrl.u32 %v1127, 7
  %v1129 = vsub.s32 0, %v1128
  %v1130 = vrot.slane %v1125, %v1129
  %v1136 = vunpack.c.l.b16 %v1087
  %v1137 = vunpack.c.l.b16 %v1088
  %v1138 = vunpack.c.l.b16 %v1089
  %v1139 = vunpack.c.l.b16 %v1090
  %v1140 = vsel %vm106, %v1138, %v1136
  %v1141 = vsel %vm106, %v1139, %v1137
  %v1142 = vpack.c.b16 %v1140, %v1140
  %v1143 = vpack.c.b16 %v1141, %v1141
  %v1178 = vunpack.c.l.b16 %v1092
  %v1179 = vunpack.c.l.b16 %v1093
  %v1180 = vunpack.c.l.b16 %v1094
  %v1181 = vunpack.c.l.b16 %v1095
  %v1182 = vunpack.c.l.b16 %v1096
  %v1183 = vunpack.c.l.b16 %v1097
  %v1184 = vunpack.c.l.b16 %v1098
  %v1185 = vunpack.c.l.b16 %v1099
  %v1186 = vunpack.c.l.b16 %v1100
  %v1187 = vunpack.c.l.b16 %v1101
  %v1188 = vunpack.c.l.b16 %v1102
  %v1189 = vunpack.c.l.b16 %v1103
  %v1190 = vunpack.c.l.b16 %v1104
  %v1191 = vunpack.c.l.b16 %v1105
  %v1192 = vunpack.c.l.b16 %v1106
  %v1193 = vunpack.c.l.b16 %v1107
  %v1194 = vunpack.c.l.b16 %v1108
  %v1195 = vunpack.c.l.b16 %v1109
  %v1196 = vunpack.c.l.b16 %v1110
  %v1197 = vunpack.c.l.b16 %v1111
  %v1198 = vunpack.c.l.b16 %v1112
  %v1199 = vunpack.c.l.b16 %v1113
  %v1200 = vunpack.c.l.b16 %v1114
  %v1201 = vunpack.c.l.b16 %v1115
  %v1202 = vunpack.c.l.b16 %v1116
  %v1203 = vunpack.c.l.b16 %v1117
  %v1204 = vunpack.c.l.b16 %v1118
  %v1205 = vunpack.c.l.b16 %v1119
  %v1206 = vunpack.c.l.b16 %v1120
  %v1207 = vunpack.c.l.b16 %v1121
  %v1208 = vunpack.c.l.b16 %v1122
  %v1209 = vunpack.c.l.b16 %v1123
  %v1210 = vpack.c.b16 %v1179, %v1178
  %v1211 = vpack.c.b16 %v1181, %v1180
  %v1212 = vpack.c.b16 %v1183, %v1182
  %v1213 = vpack.c.b16 %v1185, %v1184
  %v1214 = vpack.c.b16 %v1187, %v1186
  %v1215 = vpack.c.b16 %v1189, %v1188
  %v1216 = vpack.c.b16 %v1191, %v1190
  %v1217 = vpack.c.b16 %v1193, %v1192
  %v1218 = vpack.c.b16 %v1195, %v1194
  %v1219 = vpack.c.b16 %v1197, %v1196
  %v1220 = vpack.c.b16 %v1199, %v1198
  %v1221 = vpack.c.b16 %v1201, %v1200
  %v1222 = vpack.c.b16 %v1203, %v1202
  %v1223 = vpack.c.b16 %v1205, %v1204
  %v1224 = vpack.c.b16 %v1207, %v1206
  %v1225 = vpack.c.b16 %v1209, %v1208
  %1242 = vmatprep.subr.bf16.mxu0 0
  %1243 = vmatpush1.bf16.msra.mxu0 %v1217
  %1244 = vmatprep.subr.bf16.mxu0 0
  %1245 = vmatpush1.bf16.msra.mxu0 %v1216
  %1246 = vmatprep.subr.bf16.mxu0 0
  %1247 = vmatpush1.bf16.msra.mxu0 %v1215
  %1248 = vmatprep.subr.bf16.mxu0 0
  %1249 = vmatpush1.bf16.msra.mxu0 %v1214
  %1250 = vmatprep.subr.bf16.mxu0 0
  %1251 = vmatpush1.bf16.msra.mxu0 %v1213
  %1252 = vmatprep.subr.bf16.mxu0 0
  %1253 = vmatpush1.bf16.msra.mxu0 %v1212
  %1254 = vmatprep.subr.bf16.mxu0 0
  %1255 = vmatpush1.bf16.msra.mxu0 %v1211
  %1256 = vmatprep.subr.bf16.mxu0 0
  %1257 = vmatpush1.bf16.msra.mxu0 %v1210
  %1258 = vmatprep.subr.bf16.mxu0 0
  %1259 = vmatpush2.bf16.msra.mxu0 %v1225
  %1260 = vmatprep.subr.bf16.mxu0 0
  %1261 = vmatpush2.bf16.msra.mxu0 %v1224
  %1262 = vmatprep.subr.bf16.mxu0 0
  %1263 = vmatpush2.bf16.msra.mxu0 %v1223
  %1264 = vmatprep.subr.bf16.mxu0 0
  %1265 = vmatpush2.bf16.msra.mxu0 %v1222
  %1266 = vmatprep.subr.bf16.mxu0 0
  %1267 = vmatpush2.bf16.msra.mxu0 %v1221
  %1268 = vmatprep.subr.bf16.mxu0 0
  %1269 = vmatpush2.bf16.msra.mxu0 %v1220
  %1270 = vmatprep.subr.bf16.mxu0 0
  %1271 = vmatpush2.bf16.msra.mxu0 %v1219
  %1272 = vmatprep.subr.bf16.mxu0 0
  %1273 = vmatpush2.bf16.msra.mxu0 %v1218
  %1274 = vmatprep.mubr.bf16.mxu0 %v1143
  %1275 = vmatmul.mubr.bf16.gmra.mxu0 %v1142
  %v1276 = vpop.f32.mrf.mxu0
  %v1277 = vadd.f32 %v1130, %v1276
  %v1278 = vpop.f32.mrf.mxu0
  %v1279 = vpop.f32.mrf.mxu0
  %v1280 = vpop.f32.mrf.mxu0
  %1281 = vdwg.mxu0
  %v1282 = vmax.f32 %v1277, 0.0
  %v1283 = vpack.c.bf16 %v1282, %v1282
  %s1284 = scalar_lea.vmem %s3, 192
  %v1285 = vld [vmem:[%s1284] sm:$0xf]
  %v1286 = vld [vmem:[%s1284 + $0x4] sm:$0xf]
  %v1287 = vld [vmem:[%s1284 + $0x8] sm:$0xf]
  %v1288 = vld [vmem:[%s1284 + $0xc] sm:$0xf]
  %v1289 = vld [vmem:[%s1284 + $0x10] sm:$0xf]
  %v1290 = vld [vmem:[%s1284 + $0x14] sm:$0xf]
  %v1291 = vld [vmem:[%s1284 + $0x18] sm:$0xf]
  %v1292 = vld [vmem:[%s1284 + $0x1c] sm:$0xf]
  %v1293 = vld [vmem:[%s1284 + $0x20] sm:$0xf]
  %v1294 = vld [vmem:[%s1284 + $0x24] sm:$0xf]
  %v1295 = vld [vmem:[%s1284 + $0x28] sm:$0xf]
  %v1296 = vld [vmem:[%s1284 + $0x2c] sm:$0xf]
  %v1297 = vld [vmem:[%s1284 + $0x30] sm:$0xf]
  %v1298 = vld [vmem:[%s1284 + $0x34] sm:$0xf]
  %v1299 = vld [vmem:[%s1284 + $0x38] sm:$0xf]
  %v1300 = vld [vmem:[%s1284 + $0x3c] sm:$0xf]
  %s1301 = scalar_lea.vmem %s4, 3
  %v1302 = vld [vmem:[%s1301] sm:$0x1]
  %v1304 = vlaneseq
  %v1305 = vshrl.u32 %v1304, 7
  %v1306 = vsub.s32 0, %v1305
  %v1307 = vrot.slane %v1302, %v1306
  %v1325 = vunpack.c.l.b16 %v1285
  %v1326 = vunpack.c.l.b16 %v1286
  %v1327 = vunpack.c.l.b16 %v1287
  %v1328 = vunpack.c.l.b16 %v1288
  %v1329 = vunpack.c.l.b16 %v1289
  %v1330 = vunpack.c.l.b16 %v1290
  %v1331 = vunpack.c.l.b16 %v1291
  %v1332 = vunpack.c.l.b16 %v1292
  %v1333 = vunpack.c.l.b16 %v1293
  %v1334 = vunpack.c.l.b16 %v1294
  %v1335 = vunpack.c.l.b16 %v1295
  %v1336 = vunpack.c.l.b16 %v1296
  %v1337 = vunpack.c.l.b16 %v1297
  %v1338 = vunpack.c.l.b16 %v1298
  %v1339 = vunpack.c.l.b16 %v1299
  %v1340 = vunpack.c.l.b16 %v1300
  %v1341 = vpack.c.b16 %v1326, %v1325
  %v1342 = vpack.c.b16 %v1328, %v1327
  %v1343 = vpack.c.b16 %v1330, %v1329
  %v1344 = vpack.c.b16 %v1332, %v1331
  %v1345 = vpack.c.b16 %v1334, %v1333
  %v1346 = vpack.c.b16 %v1336, %v1335
  %v1347 = vpack.c.b16 %v1338, %v1337
  %v1348 = vpack.c.b16 %v1340, %v1339
  %1357 = vmatprep.subr.bf16.mxu0 0
  %1358 = vmatpush1.bf16.msra.mxu0 %v1348
  %1359 = vmatprep.subr.bf16.mxu0 0
  %1360 = vmatpush1.bf16.msra.mxu0 %v1347
  %1361 = vmatprep.subr.bf16.mxu0 0
  %1362 = vmatpush1.bf16.msra.mxu0 %v1346
  %1363 = vmatprep.subr.bf16.mxu0 0
  %1364 = vmatpush1.bf16.msra.mxu0 %v1345
  %1365 = vmatprep.subr.bf16.mxu0 0
  %1366 = vmatpush1.bf16.msra.mxu0 %v1344
  %1367 = vmatprep.subr.bf16.mxu0 0
  %1368 = vmatpush1.bf16.msra.mxu0 %v1343
  %1369 = vmatprep.subr.bf16.mxu0 0
  %1370 = vmatpush1.bf16.msra.mxu0 %v1342
  %1371 = vmatprep.subr.bf16.mxu0 0
  %1372 = vmatpush1.bf16.msra.mxu0 %v1341
  %1373 = vmatprep.subr.bf16.mxu0 0
  %1374 = vmatpush2.bf16.msra.mxu0 0
  %1375 = vmatprep.subr.bf16.mxu0 0
  %1376 = vmatpush2.bf16.msra.mxu0 0
  %1377 = vmatprep.subr.bf16.mxu0 0
  %1378 = vmatpush2.bf16.msra.mxu0 0
  %1379 = vmatprep.subr.bf16.mxu0 0
  %1380 = vmatpush2.bf16.msra.mxu0 0
  %1381 = vmatprep.subr.bf16.mxu0 0
  %1382 = vmatpush2.bf16.msra.mxu0 0
  %1383 = vmatprep.subr.bf16.mxu0 0
  %1384 = vmatpush2.bf16.msra.mxu0 0
  %1385 = vmatprep.subr.bf16.mxu0 0
  %1386 = vmatpush2.bf16.msra.mxu0 0
  %1387 = vmatprep.subr.bf16.mxu0 0
  %1388 = vmatpush2.bf16.msra.mxu0 0
  %1389 = vmatprep.mubr.bf16.mxu0 0
  %1390 = vmatmul.mubr.bf16.gmra.mxu0 %v1283
  %v1391 = vpop.f32.mrf.mxu0
  %v1392 = vadd.f32 %v1307, %v1391
  %v1393 = vpop.f32.mrf.mxu0
  %v1394 = vpop.f32.mrf.mxu0
  %v1395 = vpop.f32.mrf.mxu0
  %1396 = vdwg.mxu0
  %v1398 = vrot.slane %v702, 6
  %v1401 = vrot.slane %v1047, 4
  %v1404 = vrot.slane %v1392, 2
  %vm1406 = vcmask 1041408
  %v1407 = vsel %vm1406, %v357, %v1398
  %vm1408 = vcmask 1043456
  %v1409 = vsel %vm1408, %v1407, %v1401
  %vm1410 = vcmask 1045504
  %v1411 = vsel %vm1410, %v1409, %v1404
  %1412 = vst [vmem:[%s5] sm:$0xff] %v1411
  // Predicated region
  $region22: #{classification_module_forward.1} parent=0 // pred_check
    _
  $region23: #{classification_module_forward.1} parent=0 // pred_check_branch
    %1414 = sbr.rel (0) target = $region25
  $region24: #{classification_module_forward.1} parent=0 // pred_region
    _
  $region25: #{classification_module_forward.1} parent=0 // pred_fallthru
    _
  // Predicated region
  $region26: #{classification_module_forward.1} parent=0 // pred_check
    _
  $region27: #{classification_module_forward.1} parent=0 // pred_check_branch
    %1416 = sbr.rel (0) target = $region29
  $region28: #{classification_module_forward.1} parent=0 // pred_region
    _
  $region29: #{classification_module_forward.1} parent=0 // pred_fallthru
    _

</llo_original>
